<compile_context>
chip_gen: v5e
topology: v5e:2x2
jax: 0.10.0
libtpu: 0.0.40
codegen_flags: <defaults>
</compile_context>

<pallas_src>
import math

import jax
import jax.numpy as jnp
from jax.experimental import pallas as pl
from jax.experimental.pallas import tpu as pltpu

# ---- static config (small, consistent with the module) ----
BATCH = 2
SEQ = 8                      # <= n_ctx
EMBED = 32
NUM_HEADS = 4
HEAD_DIM = EMBED // NUM_HEADS
HIDDEN = 4 * EMBED           # 128, also used as the lane-dense pad width
SCALE = False
EPS = 1e-5
NTOK = BATCH * SEQ           # 16

# power-of-two shifts used instead of integer div/mod inside the kernel
SHIFT_DH = HEAD_DIM.bit_length() - 1   # // HEAD_DIM
SHIFT_N = NTOK.bit_length() - 1        # // NTOK
SHIFT_SEQ = SEQ.bit_length() - 1       # // SEQ
assert HEAD_DIM == 1 << SHIFT_DH and NTOK == 1 << SHIFT_N and SEQ == 1 << SHIFT_SEQ


def block_kernel(x_ref, w1_ref, wfc_ref, wmp_ref, vec_ref, o_ref):
    """Whole-block kernel over the flattened (B*T, C) token slab.

    x_ref   : (16, 32)   activations
    w1_ref  : (32, 128)  [wqkv (lanes 0:96) | wproj (lanes 96:128)]
    wfc_ref : (32, 128)  MLP up-projection
    wmp_ref : (128, 32)  MLP down-projection (un-transposed)
    vec_ref : (8, 128)   rows: bqkv, bproj, bfc, bmp, g1, b1, g2, b2
    o_ref   : (16, 128)  lane-dense output (result in lanes [:32], zeros after)
    """
    N, C, H, Dh, S = NTOK, EMBED, NUM_HEADS, HEAD_DIM, SEQ
    f32 = jnp.float32
    x = x_ref[...]                                               # (16, 32)

    # ---- fused q/k/v projection: one lane-dense MXU matmul + bias ----
    qkv = jnp.dot(x, w1_ref[:, :3 * C], preferred_element_type=f32)
    qkv = qkv + vec_ref[0:1, :3 * C]                             # bqkv
    q = qkv[:, 0 * C:1 * C]
    k = qkv[:, 1 * C:2 * C]
    v = qkv[:, 2 * C:3 * C]

    # ---- block-diagonal head expansion: attention stays 2-D & lane-dense ----
    # kexp[c, h*N+m] = k[m, c] if head(c) == h else 0  ->  all head scores in
    # a single (16,32)@(32,64) matmul.
    kexp = jnp.concatenate([k.T] * H, axis=1)                    # (32, 64)
    c_i = jax.lax.broadcasted_iota(jnp.int32, (C, H * N), 0)
    j_i = jax.lax.broadcasted_iota(jnp.int32, (C, H * N), 1)
    kexp = jnp.where((c_i >> SHIFT_DH) == (j_i >> SHIFT_N), kexp, 0.0)

    s = jnp.dot(q, kexp, preferred_element_type=f32)             # (16, 64)
    if SCALE:
        s = s * (1.0 / math.sqrt(Dh))

    # causal + same-batch mask on the flattened token axis (single select)
    row = jax.lax.broadcasted_iota(jnp.int32, (N, H * N), 0)     # query token
    col = jax.lax.broadcasted_iota(jnp.int32, (N, H * N), 1) & (N - 1)  # key token
    keep = (col <= row) & ((col >> SHIFT_SEQ) == (row >> SHIFT_SEQ))
    s = jnp.where(keep, s, -1e9)                                 # same zeros as reference

    # per-row max is a constant within each head segment -> cancels exactly
    e = jnp.exp(s - jnp.max(s, axis=-1, keepdims=True))          # (16, 64)

    # softmax numerator & denominator as two lane-dense matmuls:
    #   vexp[h*N+m, c] = v[m, c] if head(c) == h else 0
    #   hind[h*N+m, c] = 1       if head(c) == h else 0
    r_i = jax.lax.broadcasted_iota(jnp.int32, (H * N, C), 0)
    c2_i = jax.lax.broadcasted_iota(jnp.int32, (H * N, C), 1)
    hind = ((r_i >> SHIFT_N) == (c2_i >> SHIFT_DH)).astype(f32)  # (64, 32)
    vexp = jnp.concatenate([v] * H, axis=0) * hind               # (64, 32)

    num = jnp.dot(e, vexp, preferred_element_type=f32)           # (16, 32), heads merged
    den = jnp.dot(e, hind, preferred_element_type=f32)           # (16, 32)
    attn = num / den                                             # exact divide

    # ---- output projection (merged heads already in natural column order) ----
    a = jnp.dot(attn, w1_ref[:, 3 * C:], preferred_element_type=f32)
    a = a + vec_ref[1:2, :C]                                     # bproj

    # ---- LayerNorm exactly as the reference:
    #      g*(x-mean)/sqrt(std+eps)+b, std = unbiased (N-1) standard deviation ----
    def layer_norm(z, g, b):
        mean = jnp.mean(z, axis=-1, keepdims=True)
        var = jnp.sum((z - mean) ** 2, axis=-1, keepdims=True) * (1.0 / (C - 1))
        std = jnp.sqrt(var)
        return g * (z - mean) * jax.lax.rsqrt(std + EPS) + b

    h1 = layer_norm(x + a, vec_ref[4:5, :C], vec_ref[5:6, :C])

    # ---- MLP: relu(h1 @ wfc + bfc) @ wmp + bmp ----
    m = jnp.dot(h1, wfc_ref[...], preferred_element_type=f32) + vec_ref[2:3, :]
    m = jnp.maximum(m, 0.0)
    m = jnp.dot(m, wmp_ref[...], preferred_element_type=f32) + vec_ref[3:4, :C]

    out = layer_norm(h1 + m, vec_ref[6:7, :C], vec_ref[7:8, :C])

    # lane-dense store: one full-width (16,128) slab, result in lanes [:C]
    o_ref[...] = jnp.concatenate([out, jnp.zeros((N, HIDDEN - C), f32)], axis=1)


def pack_params(params):
    """One-time repack of the 12 module parameters into 4 lane-dense kernel inputs."""
    (wqkv, bqkv, wproj, bproj, g1, b1, wfc, bfc, wmp, bmp, g2, b2) = params
    C = EMBED
    w1 = jnp.concatenate([wqkv, wproj], axis=1)                  # (32, 128)
    vec = jnp.zeros((8, HIDDEN), jnp.float32)                    # one (8,128) tile
    vec = vec.at[0, :3 * C].set(bqkv[0])
    vec = vec.at[1, :C].set(bproj[0])
    vec = vec.at[2, :].set(bfc[0])
    vec = vec.at[3, :C].set(bmp[0])
    vec = vec.at[4, :C].set(g1[0])
    vec = vec.at[5, :C].set(b1[0])
    vec = vec.at[6, :C].set(g2[0])
    vec = vec.at[7, :C].set(b2[0])
    return w1, wfc, wmp, vec


@jax.jit
def block_forward(x, packed):
    w1, wfc, wmp, vec = packed
    B, T, C = x.shape
    x2d = x.reshape(B * T, C)                                    # free reshape outside kernel
    out2d = pl.pallas_call(
        block_kernel,
        out_shape=jax.ShapeDtypeStruct((B * T, HIDDEN), jnp.float32),
        in_specs=[pl.BlockSpec(memory_space=pltpu.MemorySpace.VMEM)] * 5,
        out_specs=pl.BlockSpec(memory_space=pltpu.MemorySpace.VMEM),
    )(x2d, w1, wfc, wmp, vec)
    return out2d[:, :C].reshape(B, T, C)


def block_reference(x, params):
    """Pure-JAX reference of the same forward semantics, for validation."""
    (wqkv, bqkv, wproj, bproj, g1, b1, wfc, bfc, wmp, bmp, g2, b2) = params
    B, T, C = x.shape
    qkv = x @ wqkv + bqkv
    q, k, v = jnp.split(qkv, 3, axis=-1)

    def split_heads(z):
        return z.reshape(B, T, NUM_HEADS, HEAD_DIM).transpose(0, 2, 1, 3)

    qh, kh, vh = split_heads(q), split_heads(k), split_heads(v)
    s = jnp.einsum('bhqd,bhkd->bhqk', qh, kh)
    if SCALE:
        s = s / math.sqrt(HEAD_DIM)
    bias = jnp.tril(jnp.ones((T, T), jnp.float32))
    s = s * bias - 1e9 * (1.0 - bias)
    p = jax.nn.softmax(s, axis=-1)
    o = jnp.einsum('bhqk,bhkd->bhqd', p, vh).transpose(0, 2, 1, 3).reshape(B, T, C)
    a = o @ wproj + bproj

    def ln(z, g, b):
        mean = jnp.mean(z, -1, keepdims=True)
        var = jnp.sum((z - mean) ** 2, -1, keepdims=True) / (C - 1)
        std = jnp.sqrt(var)
        return g * (z - mean) / jnp.sqrt(std + EPS) + b

    h1 = ln(x + a, g1, b1)
    m = jnp.maximum(h1 @ wfc + bfc, 0.0) @ wmp + bmp
    return ln(h1 + m, g2, b2)


def init_params(key):
    ks = jax.random.split(key, 6)
    C, Hd = EMBED, HIDDEN
    wqkv = 0.02 * jax.random.normal(ks[0], (C, 3 * C), jnp.float32)
    bqkv = jnp.zeros((1, 3 * C), jnp.float32)
    wproj = 0.02 * jax.random.normal(ks[1], (C, C), jnp.float32)
    bproj = jnp.zeros((1, C), jnp.float32)
    g1 = jnp.ones((1, C), jnp.float32)
    b1 = jnp.zeros((1, C), jnp.float32)
    wfc = 0.02 * jax.random.normal(ks[2], (C, Hd), jnp.float32)
    bfc = jnp.zeros((1, Hd), jnp.float32)
    wmp = 0.02 * jax.random.normal(ks[3], (Hd, C), jnp.float32)
    bmp = jnp.zeros((1, C), jnp.float32)
    g2 = jnp.ones((1, C), jnp.float32)
    b2 = jnp.zeros((1, C), jnp.float32)
    return (wqkv, bqkv, wproj, bproj, g1, b1, wfc, bfc, wmp, bmp, g2, b2)


if __name__ == "__main__":
    key = jax.random.PRNGKey(0)
    kx, kp = jax.random.split(key)
    x = jax.random.normal(kx, (BATCH, SEQ, EMBED), jnp.float32)
    params = init_params(kp)

    packed = pack_params(params)          # hoisted: packed once, reused per call
    out = jax.block_until_ready(block_forward(x, packed))

    ref = block_reference(x, params)
    assert out.shape == (BATCH, SEQ, EMBED)
    assert jnp.allclose(out, ref, atol=1e-4, rtol=1e-4), "mismatch vs JAX reference"

    print("KERNEL_OK")
</pallas_src>

<mosaic_0001>
module attributes {stable_mosaic.version = 11 : i64} {
  func.func @block_kernel(%arg0: memref<16x32xf32, #tpu.memory_space<vmem>>, %arg1: memref<32x128xf32, #tpu.memory_space<vmem>>, %arg2: memref<32x128xf32, #tpu.memory_space<vmem>>, %arg3: memref<128x32xf32, #tpu.memory_space<vmem>>, %arg4: memref<8x128xf32, #tpu.memory_space<vmem>>, %arg5: memref<16x128xf32, #tpu.memory_space<vmem>>) attributes {dimension_semantics = [], scalar_prefetch = 0 : i64, scratch_operands = 0 : i64, tpu.core_type = #tpu.core_type<tc>} {
    %c0 = arith.constant 0 : index
    %c0_0 = arith.constant 0 : index
    %0 = vector.load %arg0[%c0, %c0_0] : memref<16x32xf32, #tpu.memory_space<vmem>>, vector<16x32xf32>
    %c0_1 = arith.constant 0 : index
    %c0_2 = arith.constant 0 : index
    %1 = vector.load %arg1[%c0_1, %c0_2] : memref<32x128xf32, #tpu.memory_space<vmem>>, vector<32x96xf32>
    %cst = arith.constant dense<0.000000e+00> : vector<16x96xf32>
    %2 = tpu.matmul %0, %1, %cst {dimension_numbers = #tpu.dot_dimension_numbers<[1], [0], [0], [1], [0, 0, 1, 1], [], []>} : vector<16x32xf32>, vector<32x96xf32>, vector<16x96xf32> -> vector<16x96xf32>
    %c0_3 = arith.constant 0 : index
    %c0_4 = arith.constant 0 : index
    %3 = vector.load %arg4[%c0_3, %c0_4] : memref<8x128xf32, #tpu.memory_space<vmem>>, vector<1x96xf32>
    %4 = vector.broadcast %3 : vector<1x96xf32> to vector<16x96xf32>
    %5 = arith.addf %2, %4 : vector<16x96xf32>
    %6 = vector.extract_strided_slice %5 {offsets = [0, 0], sizes = [16, 32], strides = [1, 1]} : vector<16x96xf32> to vector<16x32xf32>
    %7 = vector.extract_strided_slice %5 {offsets = [0, 32], sizes = [16, 32], strides = [1, 1]} : vector<16x96xf32> to vector<16x32xf32>
    %8 = vector.extract_strided_slice %5 {offsets = [0, 64], sizes = [16, 32], strides = [1, 1]} : vector<16x96xf32> to vector<16x32xf32>
    %9 = tpu.transpose %7, [1, 0] : vector<16x32xf32> -> vector<32x16xf32>
    %10 = tpu.concatenate %9, %9, %9, %9 in 1 : vector<32x16xf32>, vector<32x16xf32>, vector<32x16xf32>, vector<32x16xf32> -> vector<32x64xf32>
    %11 = tpu.iota {dimensions = array<i32: 0>} : vector<32x64xi32>
    %12 = tpu.iota {dimensions = array<i32: 1>} : vector<32x64xi32>
    %c3_i32 = arith.constant 3 : i32
    %13 = vector.broadcast %c3_i32 : i32 to vector<32x64xi32>
    %14 = arith.shrsi %11, %13 : vector<32x64xi32>
    %c4_i32 = arith.constant 4 : i32
    %15 = vector.broadcast %c4_i32 : i32 to vector<32x64xi32>
    %16 = arith.shrsi %12, %15 : vector<32x64xi32>
    %17 = arith.cmpi eq, %14, %16 : vector<32x64xi32>
    %cst_5 = arith.constant 0.000000e+00 : f32
    %18 = vector.broadcast %cst_5 : f32 to vector<32x64xf32>
    %19 = arith.select %17, %10, %18 : vector<32x64xi1>, vector<32x64xf32>
    %cst_6 = arith.constant dense<0.000000e+00> : vector<16x64xf32>
    %20 = tpu.matmul %6, %19, %cst_6 {dimension_numbers = #tpu.dot_dimension_numbers<[1], [0], [0], [1], [0, 0, 1, 1], [], []>} : vector<16x32xf32>, vector<32x64xf32>, vector<16x64xf32> -> vector<16x64xf32>
    %21 = tpu.iota {dimensions = array<i32: 0>} : vector<16x64xi32>
    %22 = tpu.iota {dimensions = array<i32: 1>} : vector<16x64xi32>
    %c15_i32 = arith.constant 15 : i32
    %23 = vector.broadcast %c15_i32 : i32 to vector<16x64xi32>
    %24 = arith.andi %22, %23 : vector<16x64xi32>
    %25 = arith.cmpi sle, %24, %21 : vector<16x64xi32>
    %c3_i32_7 = arith.constant 3 : i32
    %26 = vector.broadcast %c3_i32_7 : i32 to vector<16x64xi32>
    %27 = arith.shrsi %24, %26 : vector<16x64xi32>
    %c3_i32_8 = arith.constant 3 : i32
    %28 = vector.broadcast %c3_i32_8 : i32 to vector<16x64xi32>
    %29 = arith.shrsi %21, %28 : vector<16x64xi32>
    %30 = arith.cmpi eq, %27, %29 : vector<16x64xi32>
    %31 = arith.andi %25, %30 : vector<16x64xi1>
    %cst_9 = arith.constant -1.000000e+09 : f32
    %32 = vector.broadcast %cst_9 : f32 to vector<16x64xf32>
    %33 = arith.select %31, %20, %32 : vector<16x64xi1>, vector<16x64xf32>
    %cst_10 = arith.constant dense<0xFF800000> : vector<16xf32>
    %34 = vector.multi_reduction <maximumf>, %33, %cst_10 [1] : vector<16x64xf32> to vector<16xf32>
    %35 = vector.shape_cast %34 : vector<16xf32> to vector<16x1xf32>
    %36 = vector.broadcast %35 : vector<16x1xf32> to vector<16x64xf32>
    %37 = arith.subf %33, %36 : vector<16x64xf32>
    %38 = math.exp %37 : vector<16x64xf32>
    %39 = tpu.iota {dimensions = array<i32: 0>} : vector<64x32xi32>
    %40 = tpu.iota {dimensions = array<i32: 1>} : vector<64x32xi32>
    %c4_i32_11 = arith.constant 4 : i32
    %41 = vector.broadcast %c4_i32_11 : i32 to vector<64x32xi32>
    %42 = arith.shrsi %39, %41 : vector<64x32xi32>
    %c3_i32_12 = arith.constant 3 : i32
    %43 = vector.broadcast %c3_i32_12 : i32 to vector<64x32xi32>
    %44 = arith.shrsi %40, %43 : vector<64x32xi32>
    %45 = arith.cmpi eq, %42, %44 : vector<64x32xi32>
    %46 = arith.extui %45 : vector<64x32xi1> to vector<64x32xi32>
    %47 = arith.sitofp %46 : vector<64x32xi32> to vector<64x32xf32>
    %48 = tpu.concatenate %8, %8, %8, %8 in 0 : vector<16x32xf32>, vector<16x32xf32>, vector<16x32xf32>, vector<16x32xf32> -> vector<64x32xf32>
    %49 = arith.mulf %48, %47 : vector<64x32xf32>
    %cst_13 = arith.constant dense<0.000000e+00> : vector<16x32xf32>
    %50 = tpu.matmul %38, %49, %cst_13 {dimension_numbers = #tpu.dot_dimension_numbers<[1], [0], [0], [1], [0, 0, 1, 1], [], []>} : vector<16x64xf32>, vector<64x32xf32>, vector<16x32xf32> -> vector<16x32xf32>
    %cst_14 = arith.constant dense<0.000000e+00> : vector<16x32xf32>
    %51 = tpu.matmul %38, %47, %cst_14 {dimension_numbers = #tpu.dot_dimension_numbers<[1], [0], [0], [1], [0, 0, 1, 1], [], []>} : vector<16x64xf32>, vector<64x32xf32>, vector<16x32xf32> -> vector<16x32xf32>
    %52 = arith.divf %50, %51 : vector<16x32xf32>
    %c0_15 = arith.constant 0 : index
    %c96 = arith.constant 96 : index
    %53 = vector.load %arg1[%c0_15, %c96] : memref<32x128xf32, #tpu.memory_space<vmem>>, vector<32x32xf32>
    %cst_16 = arith.constant dense<0.000000e+00> : vector<16x32xf32>
    %54 = tpu.matmul %52, %53, %cst_16 {dimension_numbers = #tpu.dot_dimension_numbers<[1], [0], [0], [1], [0, 0, 1, 1], [], []>} : vector<16x32xf32>, vector<32x32xf32>, vector<16x32xf32> -> vector<16x32xf32>
    %c1 = arith.constant 1 : index
    %c0_17 = arith.constant 0 : index
    %55 = vector.load %arg4[%c1, %c0_17] : memref<8x128xf32, #tpu.memory_space<vmem>>, vector<1x32xf32>
    %56 = vector.broadcast %55 : vector<1x32xf32> to vector<16x32xf32>
    %57 = arith.addf %54, %56 : vector<16x32xf32>
    %58 = arith.addf %0, %57 : vector<16x32xf32>
    %c4 = arith.constant 4 : index
    %c0_18 = arith.constant 0 : index
    %59 = vector.load %arg4[%c4, %c0_18] : memref<8x128xf32, #tpu.memory_space<vmem>>, vector<1x32xf32>
    %c5 = arith.constant 5 : index
    %c0_19 = arith.constant 0 : index
    %60 = vector.load %arg4[%c5, %c0_19] : memref<8x128xf32, #tpu.memory_space<vmem>>, vector<1x32xf32>
    %cst_20 = arith.constant dense<0.000000e+00> : vector<16xf32>
    %61 = vector.multi_reduction <add>, %58, %cst_20 [1] : vector<16x32xf32> to vector<16xf32>
    %62 = vector.shape_cast %61 : vector<16xf32> to vector<16x1xf32>
    %cst_21 = arith.constant 3.200000e+01 : f32
    %63 = vector.broadcast %cst_21 : f32 to vector<16x1xf32>
    %64 = arith.divf %62, %63 : vector<16x1xf32>
    %65 = vector.broadcast %64 : vector<16x1xf32> to vector<16x32xf32>
    %66 = arith.subf %58, %65 : vector<16x32xf32>
    %67 = arith.mulf %66, %66 : vector<16x32xf32>
    %cst_22 = arith.constant dense<0.000000e+00> : vector<16xf32>
    %68 = vector.multi_reduction <add>, %67, %cst_22 [1] : vector<16x32xf32> to vector<16xf32>
    %69 = vector.shape_cast %68 : vector<16xf32> to vector<16x1xf32>
    %cst_23 = arith.constant 0.0322580636 : f32
    %70 = vector.broadcast %cst_23 : f32 to vector<16x1xf32>
    %71 = arith.mulf %69, %70 : vector<16x1xf32>
    %72 = math.sqrt %71 : vector<16x1xf32>
    %73 = vector.broadcast %64 : vector<16x1xf32> to vector<16x32xf32>
    %74 = arith.subf %58, %73 : vector<16x32xf32>
    %75 = vector.broadcast %59 : vector<1x32xf32> to vector<16x32xf32>
    %76 = arith.mulf %75, %74 : vector<16x32xf32>
    %cst_24 = arith.constant 9.99999974E-6 : f32
    %77 = vector.broadcast %cst_24 : f32 to vector<16x1xf32>
    %78 = arith.addf %72, %77 : vector<16x1xf32>
    %79 = math.rsqrt %78 : vector<16x1xf32>
    %80 = vector.broadcast %79 : vector<16x1xf32> to vector<16x32xf32>
    %81 = arith.mulf %76, %80 : vector<16x32xf32>
    %82 = vector.broadcast %60 : vector<1x32xf32> to vector<16x32xf32>
    %83 = arith.addf %81, %82 : vector<16x32xf32>
    %c0_25 = arith.constant 0 : index
    %c0_26 = arith.constant 0 : index
    %84 = vector.load %arg2[%c0_25, %c0_26] : memref<32x128xf32, #tpu.memory_space<vmem>>, vector<32x128xf32>
    %cst_27 = arith.constant dense<0.000000e+00> : vector<16x128xf32>
    %85 = tpu.matmul %83, %84, %cst_27 {dimension_numbers = #tpu.dot_dimension_numbers<[1], [0], [0], [1], [0, 0, 1, 1], [], []>} : vector<16x32xf32>, vector<32x128xf32>, vector<16x128xf32> -> vector<16x128xf32>
    %c2 = arith.constant 2 : index
    %c0_28 = arith.constant 0 : index
    %86 = vector.load %arg4[%c2, %c0_28] : memref<8x128xf32, #tpu.memory_space<vmem>>, vector<1x128xf32>
    %87 = vector.broadcast %86 : vector<1x128xf32> to vector<16x128xf32>
    %88 = arith.addf %85, %87 : vector<16x128xf32>
    %cst_29 = arith.constant 0.000000e+00 : f32
    %89 = vector.broadcast %cst_29 : f32 to vector<16x128xf32>
    %90 = arith.maximumf %88, %89 : vector<16x128xf32>
    %c0_30 = arith.constant 0 : index
    %c0_31 = arith.constant 0 : index
    %91 = vector.load %arg3[%c0_30, %c0_31] : memref<128x32xf32, #tpu.memory_space<vmem>>, vector<128x32xf32>
    %cst_32 = arith.constant dense<0.000000e+00> : vector<16x32xf32>
    %92 = tpu.matmul %90, %91, %cst_32 {dimension_numbers = #tpu.dot_dimension_numbers<[1], [0], [0], [1], [0, 0, 1, 1], [], []>} : vector<16x128xf32>, vector<128x32xf32>, vector<16x32xf32> -> vector<16x32xf32>
    %c3 = arith.constant 3 : index
    %c0_33 = arith.constant 0 : index
    %93 = vector.load %arg4[%c3, %c0_33] : memref<8x128xf32, #tpu.memory_space<vmem>>, vector<1x32xf32>
    %94 = vector.broadcast %93 : vector<1x32xf32> to vector<16x32xf32>
    %95 = arith.addf %92, %94 : vector<16x32xf32>
    %96 = arith.addf %83, %95 : vector<16x32xf32>
    %c6 = arith.constant 6 : index
    %c0_34 = arith.constant 0 : index
    %97 = vector.load %arg4[%c6, %c0_34] : memref<8x128xf32, #tpu.memory_space<vmem>>, vector<1x32xf32>
    %c7 = arith.constant 7 : index
    %c0_35 = arith.constant 0 : index
    %98 = vector.load %arg4[%c7, %c0_35] : memref<8x128xf32, #tpu.memory_space<vmem>>, vector<1x32xf32>
    %cst_36 = arith.constant dense<0.000000e+00> : vector<16xf32>
    %99 = vector.multi_reduction <add>, %96, %cst_36 [1] : vector<16x32xf32> to vector<16xf32>
    %100 = vector.shape_cast %99 : vector<16xf32> to vector<16x1xf32>
    %cst_37 = arith.constant 3.200000e+01 : f32
    %101 = vector.broadcast %cst_37 : f32 to vector<16x1xf32>
    %102 = arith.divf %100, %101 : vector<16x1xf32>
    %103 = vector.broadcast %102 : vector<16x1xf32> to vector<16x32xf32>
    %104 = arith.subf %96, %103 : vector<16x32xf32>
    %105 = arith.mulf %104, %104 : vector<16x32xf32>
    %cst_38 = arith.constant dense<0.000000e+00> : vector<16xf32>
    %106 = vector.multi_reduction <add>, %105, %cst_38 [1] : vector<16x32xf32> to vector<16xf32>
    %107 = vector.shape_cast %106 : vector<16xf32> to vector<16x1xf32>
    %cst_39 = arith.constant 0.0322580636 : f32
    %108 = vector.broadcast %cst_39 : f32 to vector<16x1xf32>
    %109 = arith.mulf %107, %108 : vector<16x1xf32>
    %110 = math.sqrt %109 : vector<16x1xf32>
    %111 = vector.broadcast %102 : vector<16x1xf32> to vector<16x32xf32>
    %112 = arith.subf %96, %111 : vector<16x32xf32>
    %113 = vector.broadcast %97 : vector<1x32xf32> to vector<16x32xf32>
    %114 = arith.mulf %113, %112 : vector<16x32xf32>
    %cst_40 = arith.constant 9.99999974E-6 : f32
    %115 = vector.broadcast %cst_40 : f32 to vector<16x1xf32>
    %116 = arith.addf %110, %115 : vector<16x1xf32>
    %117 = math.rsqrt %116 : vector<16x1xf32>
    %118 = vector.broadcast %117 : vector<16x1xf32> to vector<16x32xf32>
    %119 = arith.mulf %114, %118 : vector<16x32xf32>
    %120 = vector.broadcast %98 : vector<1x32xf32> to vector<16x32xf32>
    %121 = arith.addf %119, %120 : vector<16x32xf32>
    %cst_41 = arith.constant 0.000000e+00 : f32
    %122 = vector.broadcast %cst_41 : f32 to vector<16x96xf32>
    %123 = tpu.concatenate %121, %122 in 1 : vector<16x32xf32>, vector<16x96xf32> -> vector<16x128xf32>
    %c0_42 = arith.constant 0 : index
    %c0_43 = arith.constant 0 : index
    %124 = vector.load %arg5[%c0_42, %c0_43] : memref<16x128xf32, #tpu.memory_space<vmem>>, vector<16x128xf32>
    tpu.vector_store %arg5[%c0_42, %c0_43], %123 {strides = array<i32>} : memref<16x128xf32, #tpu.memory_space<vmem>>, vector<16x128xf32>,
    return
  }
}

</mosaic_0001>

<llo_original>
// kernel: block_forward.1
$region0: #{block_forward.1}
  #allocation0 [shape = 'u32[]', space=smem, size = 0x4, offset = 0x4, fixed_abs, tag = 'smem constant byte address 0x4 - core index']
  #allocation1 [shape = 'u32[72,128]{1,0:T(1,128)}', space=vmem, size = 0x9000, scoped, tag = 'internal scratch']
  %s0 = inlined_call_operand.vmem [shape: f32[16,32], index: 0, kind: input, shape index: {}]
  %s1 = inlined_call_operand.vmem [shape: f32[32,128], index: 1, kind: input, shape index: {}]
  %s2 = inlined_call_operand.vmem [shape: f32[32,128], index: 2, kind: input, shape index: {}]
  %s3 = inlined_call_operand.vmem [shape: f32[128,32], index: 3, kind: input, shape index: {}]
  %s4 = inlined_call_operand.vmem [shape: f32[8,128], index: 4, kind: input, shape index: {}]
  %s5 = inlined_call_operand.vmem [shape: f32[16,128], index: 5, kind: output, shape index: {}]
  %s6 = sld [smem:[#allocation0]]
  $region30: #{block_forward.1} parent=0
    _
  %s8 = ssub.s32 1, %s6
  %s9 = scalar_select 0, %s8, %s6
  // Predicated region
  $region2: #{block_forward.1} parent=0 // pred_check
    _
  $region3: #{block_forward.1} parent=0 // pred_check_branch
    %11 = sbr.rel (0) target = $region5
  $region4: #{block_forward.1} parent=0 // pred_region
    _
  $region5: #{block_forward.1} parent=0 // pred_fallthru
    _
  // Predicated region
  $region6: #{block_forward.1} parent=0 // pred_check
    _
  $region7: #{block_forward.1} parent=0 // pred_check_branch
    %13 = sbr.rel (0) target = $region9
  $region8: #{block_forward.1} parent=0 // pred_region
    _
  $region9: #{block_forward.1} parent=0 // pred_fallthru
    _
  // Predicated region
  $region10: #{block_forward.1} parent=0 // pred_check
    _
  $region11: #{block_forward.1} parent=0 // pred_check_branch
    %15 = sbr.rel (0) target = $region13
  $region12: #{block_forward.1} parent=0 // pred_region
    _
  $region13: #{block_forward.1} parent=0 // pred_fallthru
    _
  // Predicated region
  $region14: #{block_forward.1} parent=0 // pred_check
    _
  $region15: #{block_forward.1} parent=0 // pred_check_branch
    %17 = sbr.rel (0) target = $region17
  $region16: #{block_forward.1} parent=0 // pred_region
    _
  $region17: #{block_forward.1} parent=0 // pred_fallthru
    _
  // Predicated region
  $region18: #{block_forward.1} parent=0 // pred_check
    _
  $region19: #{block_forward.1} parent=0 // pred_check_branch
    %19 = sbr.rel (0) target = $region21
  $region20: #{block_forward.1} parent=0 // pred_region
    _
  $region21: #{block_forward.1} parent=0 // pred_fallthru
    _
  %v20 = vld [vmem:[%s0] sm:$0xff]
  %v21 = vld [vmem:[%s0 + $0x8] sm:$0xff]
  %v22 = vld [vmem:[%s1] sm:$0xff]
  %v23 = vld [vmem:[%s1 + $0x8] sm:$0xff]
  %v24 = vld [vmem:[%s1 + $0x10] sm:$0xff]
  %v25 = vld [vmem:[%s1 + $0x18] sm:$0xff]
  %v26 = vld [vmem:[%s4] sm:$0x1]
  %v27 = vperm.slane %v26, 0
  %vm28 = vcmask 261120
  %v30 = vsel %vm28, %v20, 0
  %v33 = vsel %vm28, %v21, 0
  %35 = vmatpush.msra.mxu0 0.0
  %36 = vmatpush.msra.mxu0 0.0
  %37 = vmatpush.msra.mxu0 0.0
  %38 = vmatpush.msra.mxu0 0.0
  %39 = vmatpush.msra.mxu0 0.0
  %40 = vmatpush.msra.mxu0 0.0
  %41 = vmatpush.msra.mxu0 0.0
  %42 = vmatpush.msra.mxu0 0.0
  %43 = vmatpush.msra.mxu0 0.0
  %44 = vmatpush.msra.mxu0 0.0
  %45 = vmatpush.msra.mxu0 0.0
  %46 = vmatpush.msra.mxu0 0.0
  %47 = vmatpush.msra.mxu0 %v25
  %48 = vmatpush.msra.mxu0 %v24
  %49 = vmatpush.msra.mxu0 %v23
  %50 = vmatpush.msra.mxu0 %v22
  %51 = vmatmul.f32.gmra.mxu0 %v30
  %v52 = vpop.f32.mrf.mxu0
  %v53 = vadd.f32 %v27, %v52
  %54 = vmatmul.f32.gmra.mxu0 %v33
  %v55 = vpop.f32.mrf.mxu0
  %v56 = vadd.f32 %v27, %v55
  %57 = vdwg.mxu0
  %60 = vrot.lane.b32.xlu0 %v53, 96
  %v61 = vpop.permute.xlu0 %60
  %62 = vrot.lane.b32.xlu0 %v56, 96
  %v63 = vpop.permute.xlu0 %62
  %66 = vxpose.xlu0.b32.start [1/16] %v61, 128
  %67 = vxpose.xlu0.b32.cont [2/16] %v63, 128
  %68 = vxpose.xlu0.b32.cont [3/16] 0.0, 128
  %69 = vxpose.xlu0.b32.cont [4/16] 0.0, 128
  %70 = vxpose.xlu0.b32.cont [5/16] 0.0, 128
  %71 = vxpose.xlu0.b32.cont [6/16] 0.0, 128
  %72 = vxpose.xlu0.b32.cont [7/16] 0.0, 128
  %73 = vxpose.xlu0.b32.cont [8/16] 0.0, 128
  %74 = vxpose.xlu0.b32.cont [9/16] 0.0, 128
  %75 = vxpose.xlu0.b32.cont [10/16] 0.0, 128
  %76 = vxpose.xlu0.b32.cont [11/16] 0.0, 128
  %77 = vxpose.xlu0.b32.cont [12/16] 0.0, 128
  %78 = vxpose.xlu0.b32.cont [13/16] 0.0, 128
  %79 = vxpose.xlu0.b32.cont [14/16] 0.0, 128
  %80 = vxpose.xlu0.b32.cont [15/16] 0.0, 128
  %81 = vxpose.xlu0.b32.end [16/16] 0.0, 128
  %v82 = vpop.trf.xlu0
  %v83 = vpop.trf.xlu0
  %v84 = vpop.trf.xlu0
  %v85 = vpop.trf.xlu0
  %v86 = vpop.trf.xlu0
  %v87 = vpop.trf.xlu0
  %v88 = vpop.trf.xlu0
  %v89 = vpop.trf.xlu0
  %v90 = vpop.trf.xlu0
  %v91 = vpop.trf.xlu0
  %v92 = vpop.trf.xlu0
  %v93 = vpop.trf.xlu0
  %v94 = vpop.trf.xlu0
  %v95 = vpop.trf.xlu0
  %v96 = vpop.trf.xlu0
  %v97 = vpop.trf.xlu0
  %102 = vrot.lane.b32.xlu0 %v82, 16
  %v103 = vpop.permute.xlu0 %102
  %104 = vrot.lane.b32.xlu0 %v83, 16
  %v105 = vpop.permute.xlu0 %104
  %106 = vrot.lane.b32.xlu0 %v84, 16
  %v107 = vpop.permute.xlu0 %106
  %108 = vrot.lane.b32.xlu0 %v85, 16
  %v109 = vpop.permute.xlu0 %108
  %114 = vrot.lane.b32.xlu0 %v82, 32
  %v115 = vpop.permute.xlu0 %114
  %116 = vrot.lane.b32.xlu0 %v83, 32
  %v117 = vpop.permute.xlu0 %116
  %118 = vrot.lane.b32.xlu0 %v84, 32
  %v119 = vpop.permute.xlu0 %118
  %120 = vrot.lane.b32.xlu0 %v85, 32
  %v121 = vpop.permute.xlu0 %120
  %126 = vrot.lane.b32.xlu0 %v82, 48
  %v127 = vpop.permute.xlu0 %126
  %128 = vrot.lane.b32.xlu0 %v83, 48
  %v129 = vpop.permute.xlu0 %128
  %130 = vrot.lane.b32.xlu0 %v84, 48
  %v131 = vpop.permute.xlu0 %130
  %132 = vrot.lane.b32.xlu0 %v85, 48
  %v133 = vpop.permute.xlu0 %132
  %vm138 = vcmask 130048
  %v139 = vsel %vm138, %v82, %v103
  %v140 = vsel %vm138, %v83, %v105
  %v141 = vsel %vm138, %v84, %v107
  %v142 = vsel %vm138, %v85, %v109
  %v143 = vsel %vm28, %v139, %v115
  %v144 = vsel %vm28, %v140, %v117
  %v145 = vsel %vm28, %v141, %v119
  %v146 = vsel %vm28, %v142, %v121
  %vm147 = vcmask 392192
  %v148 = vsel %vm147, %v143, %v127
  %v149 = vsel %vm147, %v144, %v129
  %v150 = vsel %vm147, %v145, %v131
  %v151 = vsel %vm147, %v146, %v133
  %v152 = vlaneseq
  %v153 = vshrl.u32 %v152, 7
  %v154 = vadd.s32 %v153, 8
  %v155 = vadd.s32 %v153, 16
  %v156 = vadd.s32 %v153, 24
  %v157 = vlaneseq
  %v158 = vand.u32 %v157, 127
  %v159 = vshra.s32 %v153, 3
  %v160 = vshra.s32 %v154, 3
  %v161 = vshra.s32 %v155, 3
  %v162 = vshra.s32 %v156, 3
  %v163 = vshra.s32 %v158, 4
  %vm164 = vcmp.eq.s32.totalorder %v159, %v163
  %vm165 = vcmp.eq.s32.totalorder %v160, %v163
  %vm166 = vcmp.eq.s32.totalorder %v161, %v163
  %vm167 = vcmp.eq.s32.totalorder %v162, %v163
  %v168 = vsel %vm164, %v148, 0.0
  %v169 = vsel %vm165, %v149, 0.0
  %v170 = vsel %vm166, %v150, 0.0
  %v171 = vsel %vm167, %v151, 0.0
  %v172 = vsel %vm28, %v53, 0
  %v174 = vsel %vm28, %v56, 0
  %176 = vmatpush.msra.mxu0 0.0
  %177 = vmatpush.msra.mxu0 0.0
  %178 = vmatpush.msra.mxu0 0.0
  %179 = vmatpush.msra.mxu0 0.0
  %180 = vmatpush.msra.mxu0 0.0
  %181 = vmatpush.msra.mxu0 0.0
  %182 = vmatpush.msra.mxu0 0.0
  %183 = vmatpush.msra.mxu0 0.0
  %184 = vmatpush.msra.mxu0 0.0
  %185 = vmatpush.msra.mxu0 0.0
  %186 = vmatpush.msra.mxu0 0.0
  %187 = vmatpush.msra.mxu0 0.0
  %188 = vmatpush.msra.mxu0 %v171
  %189 = vmatpush.msra.mxu0 %v170
  %190 = vmatpush.msra.mxu0 %v169
  %191 = vmatpush.msra.mxu0 %v168
  %192 = vmatmul.f32.gmra.mxu0 %v172
  %v193 = vpop.f32.mrf.mxu0
  %v194 = vadd.f32 0.0, %v193
  %195 = vmatmul.f32.gmra.mxu0 %v174
  %v196 = vpop.f32.mrf.mxu0
  %v197 = vadd.f32 0.0, %v196
  %198 = vdwg.mxu0
  %v199 = vand.u32 %v158, 15
  %vm200 = vcmp.le.s32.totalorder %v199, %v153
  %vm201 = vcmp.le.s32.totalorder %v199, %v154
  %v202 = vshra.s32 %v199, 3
  %vm203 = vcmp.eq.s32.totalorder %v202, %v159
  %vm204 = vcmp.eq.s32.totalorder %v202, %v160
  %vm205 = vmand %vm200, %vm203
  %vm206 = vmand %vm201, %vm204
  %v207 = vsel %vm205, %v194, -1e+09
  %v208 = vsel %vm206, %v197, -1e+09
  %vm209 = vcmask 523264
  %v210 = vsel %vm209, %v207, -inf
  %211 = vmax.xlane.f32.xlu0 %v210
  %v212 = vpop.xlane.xlu0 %211
  %v213 = vsel %vm209, %v208, -inf
  %214 = vmax.xlane.f32.xlu0 %v213
  %v215 = vpop.xlane.xlu0 %214
  %v216 = vsub.f32 %v207, %v212
  %v217 = vsub.f32 %v208, %v215
  %v218 = vmul.f32 %v216, 1.442695
  %v219 = vpow.pop %v218
  %v220 = vmul.f32 %v217, 1.442695
  %v221 = vpow.pop %v220
  %v222 = vadd.s32 %v153, 32
  %v223 = vadd.s32 %v153, 40
  %v224 = vadd.s32 %v153, 48
  %v225 = vadd.s32 %v153, 56
  %v226 = vshra.s32 %v153, 4
  %v227 = vshra.s32 %v154, 4
  %v228 = vshra.s32 %v155, 4
  %v229 = vshra.s32 %v156, 4
  %v230 = vshra.s32 %v222, 4
  %v231 = vshra.s32 %v223, 4
  %v232 = vshra.s32 %v224, 4
  %v233 = vshra.s32 %v225, 4
  %v234 = vshra.s32 %v158, 3
  %vm235 = vcmp.eq.s32.totalorder %v226, %v234
  %vm236 = vcmp.eq.s32.totalorder %v227, %v234
  %vm237 = vcmp.eq.s32.totalorder %v228, %v234
  %vm238 = vcmp.eq.s32.totalorder %v229, %v234
  %vm239 = vcmp.eq.s32.totalorder %v230, %v234
  %vm240 = vcmp.eq.s32.totalorder %v231, %v234
  %vm241 = vcmp.eq.s32.totalorder %v232, %v234
  %vm242 = vcmp.eq.s32.totalorder %v233, %v234
  %v243 = vsel %vm235, 1, 0
  %v244 = vsel %vm236, 1, 0
  %v245 = vsel %vm237, 1, 0
  %v246 = vsel %vm238, 1, 0
  %v247 = vsel %vm239, 1, 0
  %v248 = vsel %vm240, 1, 0
  %v249 = vsel %vm241, 1, 0
  %v250 = vsel %vm242, 1, 0
  %v251 = vcvt.s32.f32 %v243
  %v252 = vcvt.s32.f32 %v244
  %v253 = vcvt.s32.f32 %v245
  %v254 = vcvt.s32.f32 %v246
  %v255 = vcvt.s32.f32 %v247
  %v256 = vcvt.s32.f32 %v248
  %v257 = vcvt.s32.f32 %v249
  %v258 = vcvt.s32.f32 %v250
  %267 = vrot.lane.b32.xlu0 %v251, 64
  %v268 = vpop.permute.xlu0 %267
  %269 = vrot.lane.b32.xlu0 %v252, 64
  %v270 = vpop.permute.xlu0 %269
  %271 = vrot.lane.b32.xlu0 %v253, 64
  %v272 = vpop.permute.xlu0 %271
  %273 = vrot.lane.b32.xlu0 %v254, 64
  %v274 = vpop.permute.xlu0 %273
  %275 = vrot.lane.b32.xlu0 %v255, 64
  %v276 = vpop.permute.xlu0 %275
  %277 = vrot.lane.b32.xlu0 %v256, 64
  %v278 = vpop.permute.xlu0 %277
  %279 = vrot.lane.b32.xlu0 %v257, 64
  %v280 = vpop.permute.xlu0 %279
  %281 = vrot.lane.b32.xlu0 %v258, 64
  %v282 = vpop.permute.xlu0 %281
  %v291 = vmul.f32 %v53, %v268
  %v292 = vmul.f32 %v56, %v270
  %v293 = vmul.f32 %v53, %v272
  %v294 = vmul.f32 %v56, %v274
  %v295 = vmul.f32 %v53, %v276
  %v296 = vmul.f32 %v56, %v278
  %v297 = vmul.f32 %v53, %v280
  %v298 = vmul.f32 %v56, %v282
  %307 = vrot.lane.b32.xlu0 %v291, 64
  %v308 = vpop.permute.xlu0 %307
  %309 = vrot.lane.b32.xlu0 %v292, 64
  %v310 = vpop.permute.xlu0 %309
  %311 = vrot.lane.b32.xlu0 %v293, 64
  %v312 = vpop.permute.xlu0 %311
  %313 = vrot.lane.b32.xlu0 %v294, 64
  %v314 = vpop.permute.xlu0 %313
  %315 = vrot.lane.b32.xlu0 %v295, 64
  %v316 = vpop.permute.xlu0 %315
  %317 = vrot.lane.b32.xlu0 %v296, 64
  %v318 = vpop.permute.xlu0 %317
  %319 = vrot.lane.b32.xlu0 %v297, 64
  %v320 = vpop.permute.xlu0 %319
  %321 = vrot.lane.b32.xlu0 %v298, 64
  %v322 = vpop.permute.xlu0 %321
  %v332 = vsel %vm209, %v219, 0
  %v335 = vsel %vm209, %v221, 0
  %337 = vmatpush.msra.mxu0 0.0
  %338 = vmatpush.msra.mxu0 0.0
  %339 = vmatpush.msra.mxu0 0.0
  %340 = vmatpush.msra.mxu0 0.0
  %341 = vmatpush.msra.mxu0 0.0
  %342 = vmatpush.msra.mxu0 0.0
  %343 = vmatpush.msra.mxu0 0.0
  %344 = vmatpush.msra.mxu0 0.0
  %345 = vmatpush.msra.mxu0 %v322
  %346 = vmatpush.msra.mxu0 %v320
  %347 = vmatpush.msra.mxu0 %v318
  %348 = vmatpush.msra.mxu0 %v316
  %349 = vmatpush.msra.mxu0 %v314
  %350 = vmatpush.msra.mxu0 %v312
  %351 = vmatpush.msra.mxu0 %v310
  %352 = vmatpush.msra.mxu0 %v308
  %353 = vmatmul.f32.gmra.mxu0 %v332
  %v354 = vpop.f32.mrf.mxu0
  %v355 = vadd.f32 0.0, %v354
  %356 = vmatmul.f32.gmra.mxu0 %v335
  %v357 = vpop.f32.mrf.mxu0
  %v358 = vadd.f32 0.0, %v357
  %359 = vdwg.mxu0
  %360 = vmatpush.msra.mxu0 0.0
  %361 = vmatpush.msra.mxu0 0.0
  %362 = vmatpush.msra.mxu0 0.0
  %363 = vmatpush.msra.mxu0 0.0
  %364 = vmatpush.msra.mxu0 0.0
  %365 = vmatpush.msra.mxu0 0.0
  %366 = vmatpush.msra.mxu0 0.0
  %367 = vmatpush.msra.mxu0 0.0
  %368 = vmatpush.msra.mxu0 %v258
  %369 = vmatpush.msra.mxu0 %v257
  %370 = vmatpush.msra.mxu0 %v256
  %371 = vmatpush.msra.mxu0 %v255
  %372 = vmatpush.msra.mxu0 %v254
  %373 = vmatpush.msra.mxu0 %v253
  %374 = vmatpush.msra.mxu0 %v252
  %375 = vmatpush.msra.mxu0 %v251
  %376 = vmatmul.f32.gmra.mxu0 %v332
  %v377 = vpop.f32.mrf.mxu0
  %v378 = vadd.f32 0.0, %v377
  %379 = vmatmul.f32.gmra.mxu0 %v335
  %v380 = vpop.f32.mrf.mxu0
  %v381 = vadd.f32 0.0, %v380
  %382 = vdwg.mxu0
  %v383 = vrcp.pop %v378
  %v384 = vmul.f32 %v378, %v383
  %v385 = vsub.f32 1.0, %v384
  %v386 = vmul.f32 %v383, %v385
  %v387 = vadd.f32 %v383, %v386
  %vm388 = vweird.f32 %v378
  %vm389 = vweird.f32 %v383
  %vm390 = vmor %vm388, %vm389
  %v391 = vsel %vm390, %v383, %v387
  %v392 = vand.u32 2147483647, %v378
  %vm393 = vcmp.eq.f32.partialorder %v392, 8.507059e+37
  %v394 = vand.u32 %v378, 2147483648
  %v395 = vor.u32 1.1754944e-38, %v394
  %v396 = vsel %vm393, %v395, %v391
  %v397 = vmul.f32 %v355, %v396
  %v398 = vrcp.pop %v381
  %v399 = vmul.f32 %v381, %v398
  %v400 = vsub.f32 1.0, %v399
  %v401 = vmul.f32 %v398, %v400
  %v402 = vadd.f32 %v398, %v401
  %vm403 = vweird.f32 %v381
  %vm404 = vweird.f32 %v398
  %vm405 = vmor %vm403, %vm404
  %v406 = vsel %vm405, %v398, %v402
  %v407 = vand.u32 2147483647, %v381
  %vm408 = vcmp.eq.f32.partialorder %v407, 8.507059e+37
  %v409 = vand.u32 %v381, 2147483648
  %v410 = vor.u32 1.1754944e-38, %v409
  %v411 = vsel %vm408, %v410, %v406
  %v412 = vmul.f32 %v358, %v411
  %v413 = vld [vmem:[%s4 + $0x1] sm:$0x1]
  %v414 = vperm.slane %v413, 0
  %419 = vrot.lane.b32.xlu0 %v22, 32
  %v420 = vpop.permute.xlu0 %419
  %421 = vrot.lane.b32.xlu0 %v23, 32
  %v422 = vpop.permute.xlu0 %421
  %423 = vrot.lane.b32.xlu0 %v24, 32
  %v424 = vpop.permute.xlu0 %423
  %425 = vrot.lane.b32.xlu0 %v25, 32
  %v426 = vpop.permute.xlu0 %425
  %v432 = vsel %vm28, %v397, 0
  %v435 = vsel %vm28, %v412, 0
  %437 = vmatpush.msra.mxu0 0.0
  %438 = vmatpush.msra.mxu0 0.0
  %439 = vmatpush.msra.mxu0 0.0
  %440 = vmatpush.msra.mxu0 0.0
  %441 = vmatpush.msra.mxu0 0.0
  %442 = vmatpush.msra.mxu0 0.0
  %443 = vmatpush.msra.mxu0 0.0
  %444 = vmatpush.msra.mxu0 0.0
  %445 = vmatpush.msra.mxu0 0.0
  %446 = vmatpush.msra.mxu0 0.0
  %447 = vmatpush.msra.mxu0 0.0
  %448 = vmatpush.msra.mxu0 0.0
  %449 = vmatpush.msra.mxu0 %v426
  %450 = vmatpush.msra.mxu0 %v424
  %451 = vmatpush.msra.mxu0 %v422
  %452 = vmatpush.msra.mxu0 %v420
  %453 = vmatmul.f32.gmra.mxu0 %v432
  %v454 = vpop.f32.mrf.mxu0
  %v455 = vadd.f32 %v414, %v454
  %456 = vmatmul.f32.gmra.mxu0 %v435
  %v457 = vpop.f32.mrf.mxu0
  %v458 = vadd.f32 %v414, %v457
  %459 = vdwg.mxu0
  %v460 = vadd.f32 %v20, %v455
  %v461 = vadd.f32 %v21, %v458
  %v462 = vld [vmem:[%s4 + $0x4] sm:$0x1]
  %v463 = vld [vmem:[%s4 + $0x5] sm:$0x1]
  %v464 = vsel %vm28, %v460, 0.0
  %465 = vadd.xlane.f32.xlu0 %v464
  %v466 = vpop.xlane.xlu0 %465
  %v467 = vsel %vm28, %v461, 0.0
  %468 = vadd.xlane.f32.xlu0 %v467
  %v469 = vpop.xlane.xlu0 %468
  %v470 = vrcp.pop 32.0
  %v471 = vmul.f32 32.0, %v470
  %v472 = vsub.f32 1.0, %v471
  %v473 = vmul.f32 %v470, %v472
  %v474 = vadd.f32 %v470, %v473
  %vm475 = vweird.f32 %v470
  %v476 = vsel %vm475, %v470, %v474
  %v477 = vmul.f32 %v466, %v476
  %v478 = vmul.f32 %v469, %v476
  %v479 = vsub.f32 %v460, %v477
  %v480 = vsub.f32 %v461, %v478
  %v481 = vmul.f32 %v479, %v479
  %v482 = vmul.f32 %v480, %v480
  %v483 = vsel %vm28, %v481, 0.0
  %484 = vadd.xlane.f32.xlu0 %v483
  %v485 = vpop.xlane.xlu0 %484
  %v486 = vsel %vm28, %v482, 0.0
  %487 = vadd.xlane.f32.xlu0 %v486
  %v488 = vpop.xlane.xlu0 %487
  %v489 = vmul.f32 %v485, 0.032258064
  %v490 = vmul.f32 %v488, 0.032258064
  %v491 = vrsqrt.pop %v489
  %v492 = vmul.f32 %v491, %v489
  %v493 = vmul.f32 %v492, %v491
  %v494 = vmul.f32 0.5, %v493
  %v495 = vsub.f32 1.5, %v494
  %v496 = vmul.f32 %v491, %v495
  %v497 = vmul.f32 %v489, %v496
  %vm498 = vcmp.eq.f32.partialorder %v489, inf
  %v499 = vsel %vm498, %v489, %v497
  %vm500 = vcmp.eq.f32.partialorder %v489, 0.0
  %v501 = vand.u32 %v489, 2147483648
  %v502 = vsel %vm500, %v501, %v499
  %v503 = vrsqrt.pop %v490
  %v504 = vmul.f32 %v503, %v490
  %v505 = vmul.f32 %v504, %v503
  %v506 = vmul.f32 0.5, %v505
  %v507 = vsub.f32 1.5, %v506
  %v508 = vmul.f32 %v503, %v507
  %v509 = vmul.f32 %v490, %v508
  %vm510 = vcmp.eq.f32.partialorder %v490, inf
  %v511 = vsel %vm510, %v490, %v509
  %vm512 = vcmp.eq.f32.partialorder %v490, 0.0
  %v513 = vand.u32 %v490, 2147483648
  %v514 = vsel %vm512, %v513, %v511
  %v515 = vperm.slane %v462, 0
  %v516 = vmul.f32 %v515, %v479
  %v517 = vmul.f32 %v515, %v480
  %v518 = vadd.f32 %v502, 1e-05
  %v519 = vadd.f32 %v514, 1e-05
  %v520 = vrsqrt.pop %v518
  %v521 = vmul.f32 %v520, %v518
  %v522 = vmul.f32 %v521, %v520
  %v523 = vmul.f32 0.5, %v522
  %v524 = vsub.f32 1.5, %v523
  %v525 = vmul.f32 %v520, %v524
  %vm526 = vweird.f32 %v518
  %vm527 = vweird.f32 %v520
  %vm528 = vmor %vm526, %vm527
  %v529 = vsel %vm528, %v520, %v525
  %v530 = vrsqrt.pop %v519
  %v531 = vmul.f32 %v530, %v519
  %v532 = vmul.f32 %v531, %v530
  %v533 = vmul.f32 0.5, %v532
  %v534 = vsub.f32 1.5, %v533
  %v535 = vmul.f32 %v530, %v534
  %vm536 = vweird.f32 %v519
  %vm537 = vweird.f32 %v530
  %vm538 = vmor %vm536, %vm537
  %v539 = vsel %vm538, %v530, %v535
  %v540 = vmul.f32 %v516, %v529
  %v541 = vmul.f32 %v517, %v539
  %v542 = vperm.slane %v463, 0
  %v543 = vadd.f32 %v540, %v542
  %v544 = vadd.f32 %v541, %v542
  %v545 = vld [vmem:[%s2] sm:$0xff]
  %v546 = vld [vmem:[%s2 + $0x8] sm:$0xff]
  %v547 = vld [vmem:[%s2 + $0x10] sm:$0xff]
  %v548 = vld [vmem:[%s2 + $0x18] sm:$0xff]
  %v549 = vld [vmem:[%s4 + $0x2] sm:$0x1]
  %v550 = vperm.slane %v549, 0
  %v552 = vsel %vm28, %v543, 0
  %v555 = vsel %vm28, %v544, 0
  %557 = vmatpush.msra.mxu0 0.0
  %558 = vmatpush.msra.mxu0 0.0
  %559 = vmatpush.msra.mxu0 0.0
  %560 = vmatpush.msra.mxu0 0.0
  %561 = vmatpush.msra.mxu0 0.0
  %562 = vmatpush.msra.mxu0 0.0
  %563 = vmatpush.msra.mxu0 0.0
  %564 = vmatpush.msra.mxu0 0.0
  %565 = vmatpush.msra.mxu0 0.0
  %566 = vmatpush.msra.mxu0 0.0
  %567 = vmatpush.msra.mxu0 0.0
  %568 = vmatpush.msra.mxu0 0.0
  %569 = vmatpush.msra.mxu0 %v548
  %570 = vmatpush.msra.mxu0 %v547
  %571 = vmatpush.msra.mxu0 %v546
  %572 = vmatpush.msra.mxu0 %v545
  %573 = vmatmul.f32.gmra.mxu0 %v552
  %v574 = vpop.f32.mrf.mxu0
  %v575 = vadd.f32 %v550, %v574
  %576 = vmatmul.f32.gmra.mxu0 %v555
  %v577 = vpop.f32.mrf.mxu0
  %v578 = vadd.f32 %v550, %v577
  %579 = vdwg.mxu0
  %v580 = vmax.f32 %v575, 0.0
  %v581 = vmax.f32 %v578, 0.0
  %v582 = vld [vmem:[%s3] sm:$0xff]
  %v583 = vld [vmem:[%s3 + $0x8] sm:$0xff]
  %v584 = vld [vmem:[%s3 + $0x10] sm:$0xff]
  %v585 = vld [vmem:[%s3 + $0x18] sm:$0xff]
  %v586 = vld [vmem:[%s3 + $0x20] sm:$0xff]
  %v587 = vld [vmem:[%s3 + $0x28] sm:$0xff]
  %v588 = vld [vmem:[%s3 + $0x30] sm:$0xff]
  %v589 = vld [vmem:[%s3 + $0x38] sm:$0xff]
  %v590 = vld [vmem:[%s3 + $0x40] sm:$0xff]
  %v591 = vld [vmem:[%s3 + $0x48] sm:$0xff]
  %v592 = vld [vmem:[%s3 + $0x50] sm:$0xff]
  %v593 = vld [vmem:[%s3 + $0x58] sm:$0xff]
  %v594 = vld [vmem:[%s3 + $0x60] sm:$0xff]
  %v595 = vld [vmem:[%s3 + $0x68] sm:$0xff]
  %v596 = vld [vmem:[%s3 + $0x70] sm:$0xff]
  %v597 = vld [vmem:[%s3 + $0x78] sm:$0xff]
  %v598 = vld [vmem:[%s4 + $0x3] sm:$0x1]
  %v599 = vperm.slane %v598, 0
  %600 = vmatpush.msra.mxu0 %v597
  %601 = vmatpush.msra.mxu0 %v596
  %602 = vmatpush.msra.mxu0 %v595
  %603 = vmatpush.msra.mxu0 %v594
  %604 = vmatpush.msra.mxu0 %v593
  %605 = vmatpush.msra.mxu0 %v592
  %606 = vmatpush.msra.mxu0 %v591
  %607 = vmatpush.msra.mxu0 %v590
  %608 = vmatpush.msra.mxu0 %v589
  %609 = vmatpush.msra.mxu0 %v588
  %610 = vmatpush.msra.mxu0 %v587
  %611 = vmatpush.msra.mxu0 %v586
  %612 = vmatpush.msra.mxu0 %v585
  %613 = vmatpush.msra.mxu0 %v584
  %614 = vmatpush.msra.mxu0 %v583
  %615 = vmatpush.msra.mxu0 %v582
  %616 = vmatmul.f32.gmra.mxu0 %v580
  %v617 = vpop.f32.mrf.mxu0
  %v618 = vadd.f32 %v599, %v617
  %619 = vmatmul.f32.gmra.mxu0 %v581
  %v620 = vpop.f32.mrf.mxu0
  %v621 = vadd.f32 %v599, %v620
  %622 = vdwg.mxu0
  %v623 = vadd.f32 %v543, %v618
  %v624 = vadd.f32 %v544, %v621
  %v625 = vld [vmem:[%s4 + $0x6] sm:$0x1]
  %v626 = vld [vmem:[%s4 + $0x7] sm:$0x1]
  %v627 = vsel %vm28, %v623, 0.0
  %628 = vadd.xlane.f32.xlu0 %v627
  %v629 = vpop.xlane.xlu0 %628
  %v630 = vsel %vm28, %v624, 0.0
  %631 = vadd.xlane.f32.xlu0 %v630
  %v632 = vpop.xlane.xlu0 %631
  %v633 = vmul.f32 %v629, %v476
  %v634 = vmul.f32 %v632, %v476
  %v635 = vsub.f32 %v623, %v633
  %v636 = vsub.f32 %v624, %v634
  %v637 = vmul.f32 %v635, %v635
  %v638 = vmul.f32 %v636, %v636
  %v639 = vsel %vm28, %v637, 0.0
  %640 = vadd.xlane.f32.xlu0 %v639
  %v641 = vpop.xlane.xlu0 %640
  %v642 = vsel %vm28, %v638, 0.0
  %643 = vadd.xlane.f32.xlu0 %v642
  %v644 = vpop.xlane.xlu0 %643
  %v645 = vmul.f32 %v641, 0.032258064
  %v646 = vmul.f32 %v644, 0.032258064
  %v647 = vrsqrt.pop %v645
  %v648 = vmul.f32 %v647, %v645
  %v649 = vmul.f32 %v648, %v647
  %v650 = vmul.f32 0.5, %v649
  %v651 = vsub.f32 1.5, %v650
  %v652 = vmul.f32 %v647, %v651
  %v653 = vmul.f32 %v645, %v652
  %vm654 = vcmp.eq.f32.partialorder %v645, inf
  %v655 = vsel %vm654, %v645, %v653
  %vm656 = vcmp.eq.f32.partialorder %v645, 0.0
  %v657 = vand.u32 %v645, 2147483648
  %v658 = vsel %vm656, %v657, %v655
  %v659 = vrsqrt.pop %v646
  %v660 = vmul.f32 %v659, %v646
  %v661 = vmul.f32 %v660, %v659
  %v662 = vmul.f32 0.5, %v661
  %v663 = vsub.f32 1.5, %v662
  %v664 = vmul.f32 %v659, %v663
  %v665 = vmul.f32 %v646, %v664
  %vm666 = vcmp.eq.f32.partialorder %v646, inf
  %v667 = vsel %vm666, %v646, %v665
  %vm668 = vcmp.eq.f32.partialorder %v646, 0.0
  %v669 = vand.u32 %v646, 2147483648
  %v670 = vsel %vm668, %v669, %v667
  %v671 = vperm.slane %v625, 0
  %v672 = vmul.f32 %v671, %v635
  %v673 = vmul.f32 %v671, %v636
  %v674 = vadd.f32 %v658, 1e-05
  %v675 = vadd.f32 %v670, 1e-05
  %v676 = vrsqrt.pop %v674
  %v677 = vmul.f32 %v676, %v674
  %v678 = vmul.f32 %v677, %v676
  %v679 = vmul.f32 0.5, %v678
  %v680 = vsub.f32 1.5, %v679
  %v681 = vmul.f32 %v676, %v680
  %vm682 = vweird.f32 %v674
  %vm683 = vweird.f32 %v676
  %vm684 = vmor %vm682, %vm683
  %v685 = vsel %vm684, %v676, %v681
  %v686 = vrsqrt.pop %v675
  %v687 = vmul.f32 %v686, %v675
  %v688 = vmul.f32 %v687, %v686
  %v689 = vmul.f32 0.5, %v688
  %v690 = vsub.f32 1.5, %v689
  %v691 = vmul.f32 %v686, %v690
  %vm692 = vweird.f32 %v675
  %vm693 = vweird.f32 %v686
  %vm694 = vmor %vm692, %vm693
  %v695 = vsel %vm694, %v686, %v691
  %v696 = vmul.f32 %v672, %v685
  %v697 = vmul.f32 %v673, %v695
  %v698 = vperm.slane %v626, 0
  %v699 = vadd.f32 %v696, %v698
  %v700 = vadd.f32 %v697, %v698
  %v701 = vsel %vm28, %v699, 0.0
  %v702 = vsel %vm28, %v700, 0.0
  %703 = vst [vmem:[%s5] sm:$0xff] %v701
  %704 = vst [vmem:[%s5 + $0x8] sm:$0xff] %v702
  // Predicated region
  $region22: #{block_forward.1} parent=0 // pred_check
    _
  $region23: #{block_forward.1} parent=0 // pred_check_branch
    %706 = sbr.rel (0) target = $region25
  $region24: #{block_forward.1} parent=0 // pred_region
    _
  $region25: #{block_forward.1} parent=0 // pred_fallthru
    _
  // Predicated region
  $region26: #{block_forward.1} parent=0 // pred_check
    _
  $region27: #{block_forward.1} parent=0 // pred_check_branch
    %708 = sbr.rel (0) target = $region29
  $region28: #{block_forward.1} parent=0 // pred_region
    _
  $region29: #{block_forward.1} parent=0 // pred_fallthru
    _

</llo_original>
